<compile_context>
chip_gen: v7x
topology: tpu7x:2x2x1
jax: 0.10.0
libtpu: 0.0.40
codegen_flags: <defaults>
</compile_context>

<pallas_src>
import functools

import numpy as np
import jax
import jax.numpy as jnp
from jax.experimental import pallas as pl
from jax.experimental.pallas import tpu as pltpu

_MIB = 1 << 20


def _cdiv(a, b):
    return -(-a // b)


def _round_up(a, m):
    return _cdiv(a, m) * m


def _spatial_attention_kernel(x_ref, halo_ref, w_ref, b_ref, o_ref, *,
                              true_len, kernel_size):
    # x_ref   : (NB, C, TL)  VMEM tile of x for (batch-block bb, length-tile j)
    # halo_ref: (NB, 1, 2, HW) VMEM; row 0 = avg halo, row 1 = max halo,
    #           cols [:pad] = left halo, cols [pad:2*pad] = right halo
    # w_ref   : (2*K,) SMEM flat conv weights: first K avg taps, next K max taps
    # b_ref   : (1,)   SMEM conv bias
    # o_ref   : (NB, C, TL) VMEM output tile
    NB, C, TL = x_ref.shape
    K = kernel_size
    pad = K // 2

    xv = x_ref[...]                                            # native dtype

    # Channel (sublane) reductions with f32 accumulation; no persistent f32
    # copy of the whole tile is materialized.
    avg = jnp.mean(xv, axis=1, dtype=jnp.float32)              # (NB, TL)
    mx = jnp.max(xv, axis=1).astype(jnp.float32)               # (NB, TL)

    # Ragged last length-tile: out-of-range tile columns hold unspecified
    # (stale VMEM) data — zero their avg/max so the conv sees exactly Conv1d's
    # zero padding.  (Their output columns are never written back.)
    if true_len % TL != 0:
        col = jax.lax.broadcasted_iota(jnp.int32, (1, TL), 1)
        valid = (pl.program_id(1) * TL + col) < true_len
        avg = jnp.where(valid, avg, 0.0)
        mx = jnp.where(valid, mx, 0.0)

    # Stitch the pre-reduced boundary halo onto the tile -> (NB, TL + 2*pad).
    halo = halo_ref[:, 0].astype(jnp.float32)                  # (NB, 2, HW)
    avg_w = jnp.concatenate(
        [halo[:, 0, :pad], avg, halo[:, 0, pad:2 * pad]], axis=-1)
    mx_w = jnp.concatenate(
        [halo[:, 1, :pad], mx, halo[:, 1, pad:2 * pad]], axis=-1)

    # Hoist SMEM scalar reads out of the statically unrolled tap loop.
    w_avg = [w_ref[k] for k in range(K)]
    w_max = [w_ref[K + k] for k in range(K)]
    bias = b_ref[0]

    # Conv1d(2 -> 1, kernel=K, "same" zero padding), cross-correlation:
    #   acc[l] = bias + sum_k w_avg[k]*AVG[l+k-pad] + w_max[k]*MAX[l+k-pad]
    acc = jnp.full((NB, TL), bias, jnp.float32)
    for k in range(K):
        acc = acc + w_avg[k] * avg_w[:, k:k + TL] + w_max[k] * mx_w[:, k:k + TL]

    attn = jax.nn.sigmoid(acc)                                  # (NB, TL)
    o_ref[...] = (xv * attn[:, None, :].astype(xv.dtype)).astype(o_ref.dtype)


def spatial_attention(x, conv_w, conv_b, *, tile_len=None):
    """x: [B, C, L]; conv_w: [1, 2, K]; conv_b: [1]. Returns [B, C, L]."""
    B, C, L = map(int, x.shape)
    K = int(conv_w.shape[-1])
    pad = K // 2
    itemsize = jnp.dtype(x.dtype).itemsize

    # Flat 1-D SMEM weights: [avg taps (K), max taps (K)]; bias separately.
    w_flat = conv_w.reshape(2 * K).astype(jnp.float32)
    b_flat = conv_b.reshape(1).astype(jnp.float32)

    # ---- Generation-aware VMEM / block-size budgets --------------------------
    try:
        vmem_cap = int(pltpu.get_tpu_info().vmem_capacity_bytes)
    except Exception:  # be conservative (v7x-class, 64 MiB VMEM)
        vmem_cap = 64 * _MIB
    if vmem_cap <= 96 * _MIB:        # v7x: 64 MiB VMEM, ~3.2 TB/s HBM
        byte_floor, ws_budget, vmem_limit = 4 * _MIB, 36 * _MIB, 48 * _MIB
    else:                            # v5e / v6e: 128 MiB VMEM
        byte_floor, ws_budget, vmem_limit = 2 * _MIB, 56 * _MIB, 80 * _MIB

    # Sublane-padded channel count: how a (C, TL) slice is physically stored.
    sub = 8 * max(1, 4 // itemsize)              # 8 (f32), 16 (bf16), 32 (int8)
    c_pad = _round_up(C, sub)
    # Per length-column, per batch-row VMEM cost: double-buffered in + out
    # blocks (sublane padded) plus ~32 B of f32 temporaries (windows/attn).
    col_bytes = 4 * c_pad * itemsize + 32

    # ---- Length-tile TL (lane dense; grown toward the byte floor) ------------
    tl_cap = max(128, (int(ws_budget // col_bytes) // 128) * 128)
    if tile_len is not None:
        tl_req = max(128, (int(tile_len) // 128) * 128)
        TL = L if L <= tl_req else min(tl_req, tl_cap)
    elif L <= tl_cap:
        TL = L                                   # full-length block (any L)
    else:
        n0 = _cdiv(L, tl_cap)
        # Re-balance so the ragged last tile is not tiny (same tile count).
        TL = min(tl_cap, _round_up(_cdiv(L, n0), 128))
    n_tiles = _cdiv(L, TL)

    # Give the second v7x TensorCore something to do when B == 1.
    if tile_len is None and B == 1 and n_tiles == 1 and L >= 256:
        TL = _round_up(_cdiv(L, 2), 128)
        n_tiles = _cdiv(L, TL)

    # ---- Batch folding: NB rows per block to reach the per-step byte floor ---
    NB = 1
    if B > 1:
        step_bytes = c_pad * TL * itemsize
        if step_bytes < byte_floor:
            NB = min(B, _cdiv(byte_floor, step_bytes))
        NB = min(NB, max(1, int(ws_budget // (col_bytes * TL))))
        if n_tiles == 1:
            NB = min(NB, _cdiv(B, 2))            # keep >= 2 grid steps (v7x)
        NB = max(NB, 1)
    n_bblocks = _cdiv(B, NB)

    # ---- Pre-reduce the tiny per-boundary halo: (B, n_tiles, 2, HW) ----------
    # Only 2*pad columns of x per interior tile boundary are re-read here, so
    # the kernel's single pass over x stays ~optimal.  The lane dim is padded
    # to 128 so the per-step halo load is one unmasked vreg row.
    halo_lanes = max(128, _round_up(2 * pad, 128))
    if n_tiles > 1:
        idx = np.concatenate(
            [np.arange(m * TL - pad, m * TL + pad) for m in range(1, n_tiles)])
        in_bounds = idx < L                          # left side is always >= 0
        idx = np.clip(idx, 0, L - 1)
        xb = jnp.take(x, jnp.asarray(idx, dtype=jnp.int32), axis=2)
        xb = xb.reshape(B, C, n_tiles - 1, 2 * pad)
        avg_b = jnp.mean(xb, axis=1, dtype=jnp.float32)         # (B, nt-1, 2p)
        max_b = jnp.max(xb, axis=1).astype(jnp.float32)
        vmask = jnp.asarray(in_bounds.reshape(1, n_tiles - 1, 2 * pad))
        avg_b = jnp.where(vmask, avg_b, 0.0)     # matches conv zero padding
        max_b = jnp.where(vmask, max_b, 0.0)
        bnd = jnp.stack([avg_b, max_b], axis=2)                 # (B,nt-1,2,2p)
        zcap = jnp.zeros((B, 1, 2, pad), jnp.float32)
        left = jnp.concatenate([zcap, bnd[..., :pad]], axis=1)  # (B,nt,2,p)
        right = jnp.concatenate([bnd[..., pad:], zcap], axis=1)  # (B,nt,2,p)
        halo = jnp.concatenate([left, right], axis=3)           # (B,nt,2,2p)
    else:
        halo = jnp.zeros((B, 1, 2, 2 * pad), jnp.float32)       # zero conv pad
    halo = jnp.pad(halo, ((0, 0), (0, 0), (0, 0), (0, halo_lanes - 2 * pad)))

    grid_spec = pltpu.PrefetchScalarGridSpec(
        num_scalar_prefetch=0,
        grid=(n_bblocks, n_tiles),
        in_specs=[
            # x tile: kernel sees (NB, C, TL); partial edge blocks are handled
            # (in-bounds region only) on both the batch and length axes.
            pl.BlockSpec((NB, C, TL), lambda bb, j: (bb, 0, j)),
            # per-(batch-block, tile) halo: kernel sees (NB, 1, 2, halo_lanes)
            pl.BlockSpec((NB, 1, 2, halo_lanes), lambda bb, j: (bb, j, 0, 0)),
            pl.BlockSpec(memory_space=pltpu.MemorySpace.SMEM),   # conv weights
            pl.BlockSpec(memory_space=pltpu.MemorySpace.SMEM),   # conv bias
        ],
        out_specs=pl.BlockSpec((NB, C, TL), lambda bb, j: (bb, 0, j)),
    )

    cost = pl.CostEstimate(
        flops=B * L * (3 * C + 4 * K + 2),         # reductions + conv + scale
        transcendentals=B * L,                     # sigmoid
        bytes_accessed=(2 * B * C * L * itemsize   # single pass: x in + out
                        + int(halo.size) * 4       # halo side input
                        + (2 * K + 1) * 4),        # weights + bias
    )

    out = pl.pallas_call(
        functools.partial(_spatial_attention_kernel, true_len=L, kernel_size=K),
        out_shape=jax.ShapeDtypeStruct((B, C, L), x.dtype),
        grid_spec=grid_spec,
        compiler_params=pltpu.CompilerParams(
            dimension_semantics=("parallel", "parallel"),
            vmem_limit_bytes=vmem_limit,
        ),
        cost_estimate=cost,
    )(x, halo, w_flat, b_flat)
    return out


def _reference(x, conv_w, conv_b):
    """Pure-JAX reference of the PyTorch forward (for sanity checking)."""
    avg = jnp.mean(x, axis=1, keepdims=True)
    mx = jnp.max(x, axis=1, keepdims=True)
    x_cat = jnp.concatenate([avg, mx], axis=1)                 # [B, 2, L]
    att = jax.lax.conv_general_dilated(
        x_cat, conv_w, window_strides=(1,),
        padding=[(conv_w.shape[-1] // 2, conv_w.shape[-1] // 2)],
        dimension_numbers=("NCH", "OIH", "NCH"))
    att = jax.nn.sigmoid(att + conv_b.reshape(1, 1, 1))
    return x * att


if __name__ == "__main__":
    key = jax.random.PRNGKey(0)
    kx, kw, kb = jax.random.split(key, 3)

    K = 7
    conv_w = jax.random.normal(kw, (1, 2, K), dtype=jnp.float32) * 0.1
    conv_b = jax.random.normal(kb, (1,), dtype=jnp.float32) * 0.1

    # Small shapes implied by the module forward: [batch=2, channels=4, length=16].
    x = jax.random.normal(kx, (2, 4, 16), dtype=jnp.float32)
    out = jax.block_until_ready(spatial_attention(x, conv_w, conv_b))
    ref = _reference(x, conv_w, conv_b)
    assert out.shape == x.shape
    assert jnp.allclose(out, ref, atol=1e-5, rtol=1e-5)

    # Multi-tile path: length tiling + boundary halo + ragged last tile
    # (no full-array pad/slice any more) + batch folding.
    x2 = jax.random.normal(jax.random.fold_in(kx, 1), (2, 8, 300),
                           dtype=jnp.float32)
    out2 = jax.block_until_ready(
        spatial_attention(x2, conv_w, conv_b, tile_len=128))
    ref2 = _reference(x2, conv_w, conv_b)
    assert out2.shape == x2.shape
    assert jnp.allclose(out2, ref2, atol=1e-5, rtol=1e-5)

    # Batch-folding path with a partial batch block (B=5 folded 3 rows/block).
    x3 = jax.random.normal(jax.random.fold_in(kx, 2), (5, 4, 40),
                           dtype=jnp.float32)
    out3 = jax.block_until_ready(spatial_attention(x3, conv_w, conv_b))
    ref3 = _reference(x3, conv_w, conv_b)
    assert out3.shape == x3.shape
    assert jnp.allclose(out3, ref3, atol=1e-5, rtol=1e-5)

    print("KERNEL_OK")
</pallas_src>

<mosaic_0001>
module attributes {stable_mosaic.version = 11 : i64} {
  func.func @_spatial_attention_kernel(%arg0: i32, %arg1: i32, %arg2: memref<1x4x16xf32, #tpu.memory_space<vmem>>, %arg3: memref<1x1x2x128xf32, #tpu.memory_space<vmem>>, %arg4: memref<14xf32, #tpu.memory_space<smem>>, %arg5: memref<1xf32, #tpu.memory_space<smem>>, %arg6: memref<1x4x16xf32, #tpu.memory_space<vmem>>) attributes {dimension_semantics = [#tpu.dimension_semantics<parallel>, #tpu.dimension_semantics<parallel>], iteration_bounds = array<i64: 2, 1>, scalar_prefetch = 0 : i64, scratch_operands = 0 : i64, tpu.core_type = #tpu.core_type<tc>, window_params = [{transform_indices = @transform_0, window_bounds = array<i64: 1, 4, 16>}, {transform_indices = @transform_1, window_bounds = array<i64: 1, 1, 2, 128>}, {transform_indices = @transform_2, window_bounds = array<i64: 14>}, {transform_indices = @transform_3, window_bounds = array<i64: 1>}, {transform_indices = @transform_4, window_bounds = array<i64: 1, 4, 16>}]} {
    %c0 = arith.constant 0 : index
    %c0_0 = arith.constant 0 : index
    %c0_1 = arith.constant 0 : index
    %0 = vector.load %arg2[%c0, %c0_0, %c0_1] : memref<1x4x16xf32, #tpu.memory_space<vmem>>, vector<1x4x16xf32>
    %cst = arith.constant dense<0.000000e+00> : vector<1x16xf32>
    %1 = vector.multi_reduction <add>, %0, %cst [1] : vector<1x4x16xf32> to vector<1x16xf32>
    %cst_2 = arith.constant 4.000000e+00 : f32
    %2 = vector.broadcast %cst_2 : f32 to vector<1x16xf32>
    %3 = arith.divf %1, %2 : vector<1x16xf32>
    %cst_3 = arith.constant dense<0xFF800000> : vector<1x16xf32>
    %4 = vector.multi_reduction <maximumf>, %0, %cst_3 [1] : vector<1x4x16xf32> to vector<1x16xf32>
    %c0_4 = arith.constant 0 : index
    %c0_5 = arith.constant 0 : index
    %c0_6 = arith.constant 0 : index
    %c0_7 = arith.constant 0 : index
    %5 = vector.load %arg3[%c0_4, %c0_5, %c0_6, %c0_7] : memref<1x1x2x128xf32, #tpu.memory_space<vmem>>, vector<1x1x2x128xf32>
    %6 = vector.shape_cast %5 : vector<1x1x2x128xf32> to vector<1x2x128xf32>
    %7 = vector.extract_strided_slice %6 {offsets = [0, 0, 0], sizes = [1, 1, 3], strides = [1, 1, 1]} : vector<1x2x128xf32> to vector<1x1x3xf32>
    %8 = vector.shape_cast %7 : vector<1x1x3xf32> to vector<1x3xf32>
    %9 = vector.extract_strided_slice %6 {offsets = [0, 0, 3], sizes = [1, 1, 3], strides = [1, 1, 1]} : vector<1x2x128xf32> to vector<1x1x3xf32>
    %10 = vector.shape_cast %9 : vector<1x1x3xf32> to vector<1x3xf32>
    %11 = tpu.concatenate %8, %3, %10 in 1 : vector<1x3xf32>, vector<1x16xf32>, vector<1x3xf32> -> vector<1x22xf32>
    %12 = vector.extract_strided_slice %6 {offsets = [0, 1, 0], sizes = [1, 1, 3], strides = [1, 1, 1]} : vector<1x2x128xf32> to vector<1x1x3xf32>
    %13 = vector.shape_cast %12 : vector<1x1x3xf32> to vector<1x3xf32>
    %14 = vector.extract_strided_slice %6 {offsets = [0, 1, 3], sizes = [1, 1, 3], strides = [1, 1, 1]} : vector<1x2x128xf32> to vector<1x1x3xf32>
    %15 = vector.shape_cast %14 : vector<1x1x3xf32> to vector<1x3xf32>
    %16 = tpu.concatenate %13, %4, %15 in 1 : vector<1x3xf32>, vector<1x16xf32>, vector<1x3xf32> -> vector<1x22xf32>
    %c0_8 = arith.constant 0 : index
    %17 = memref.load %arg4[%c0_8] : memref<14xf32, #tpu.memory_space<smem>>
    %c1 = arith.constant 1 : index
    %18 = memref.load %arg4[%c1] : memref<14xf32, #tpu.memory_space<smem>>
    %c2 = arith.constant 2 : index
    %19 = memref.load %arg4[%c2] : memref<14xf32, #tpu.memory_space<smem>>
    %c3 = arith.constant 3 : index
    %20 = memref.load %arg4[%c3] : memref<14xf32, #tpu.memory_space<smem>>
    %c4 = arith.constant 4 : index
    %21 = memref.load %arg4[%c4] : memref<14xf32, #tpu.memory_space<smem>>
    %c5 = arith.constant 5 : index
    %22 = memref.load %arg4[%c5] : memref<14xf32, #tpu.memory_space<smem>>
    %c6 = arith.constant 6 : index
    %23 = memref.load %arg4[%c6] : memref<14xf32, #tpu.memory_space<smem>>
    %c7 = arith.constant 7 : index
    %24 = memref.load %arg4[%c7] : memref<14xf32, #tpu.memory_space<smem>>
    %c8 = arith.constant 8 : index
    %25 = memref.load %arg4[%c8] : memref<14xf32, #tpu.memory_space<smem>>
    %c9 = arith.constant 9 : index
    %26 = memref.load %arg4[%c9] : memref<14xf32, #tpu.memory_space<smem>>
    %c10 = arith.constant 10 : index
    %27 = memref.load %arg4[%c10] : memref<14xf32, #tpu.memory_space<smem>>
    %c11 = arith.constant 11 : index
    %28 = memref.load %arg4[%c11] : memref<14xf32, #tpu.memory_space<smem>>
    %c12 = arith.constant 12 : index
    %29 = memref.load %arg4[%c12] : memref<14xf32, #tpu.memory_space<smem>>
    %c13 = arith.constant 13 : index
    %30 = memref.load %arg4[%c13] : memref<14xf32, #tpu.memory_space<smem>>
    %c0_9 = arith.constant 0 : index
    %31 = memref.load %arg5[%c0_9] : memref<1xf32, #tpu.memory_space<smem>>
    %32 = vector.broadcast %31 : f32 to vector<1x16xf32>
    %33 = vector.extract_strided_slice %11 {offsets = [0, 0], sizes = [1, 16], strides = [1, 1]} : vector<1x22xf32> to vector<1x16xf32>
    %34 = vector.broadcast %17 : f32 to vector<1x16xf32>
    %35 = arith.mulf %34, %33 : vector<1x16xf32>
    %36 = arith.addf %32, %35 : vector<1x16xf32>
    %37 = vector.extract_strided_slice %16 {offsets = [0, 0], sizes = [1, 16], strides = [1, 1]} : vector<1x22xf32> to vector<1x16xf32>
    %38 = vector.broadcast %24 : f32 to vector<1x16xf32>
    %39 = arith.mulf %38, %37 : vector<1x16xf32>
    %40 = arith.addf %36, %39 : vector<1x16xf32>
    %41 = vector.extract_strided_slice %11 {offsets = [0, 1], sizes = [1, 16], strides = [1, 1]} : vector<1x22xf32> to vector<1x16xf32>
    %42 = vector.broadcast %18 : f32 to vector<1x16xf32>
    %43 = arith.mulf %42, %41 : vector<1x16xf32>
    %44 = arith.addf %40, %43 : vector<1x16xf32>
    %45 = vector.extract_strided_slice %16 {offsets = [0, 1], sizes = [1, 16], strides = [1, 1]} : vector<1x22xf32> to vector<1x16xf32>
    %46 = vector.broadcast %25 : f32 to vector<1x16xf32>
    %47 = arith.mulf %46, %45 : vector<1x16xf32>
    %48 = arith.addf %44, %47 : vector<1x16xf32>
    %49 = vector.extract_strided_slice %11 {offsets = [0, 2], sizes = [1, 16], strides = [1, 1]} : vector<1x22xf32> to vector<1x16xf32>
    %50 = vector.broadcast %19 : f32 to vector<1x16xf32>
    %51 = arith.mulf %50, %49 : vector<1x16xf32>
    %52 = arith.addf %48, %51 : vector<1x16xf32>
    %53 = vector.extract_strided_slice %16 {offsets = [0, 2], sizes = [1, 16], strides = [1, 1]} : vector<1x22xf32> to vector<1x16xf32>
    %54 = vector.broadcast %26 : f32 to vector<1x16xf32>
    %55 = arith.mulf %54, %53 : vector<1x16xf32>
    %56 = arith.addf %52, %55 : vector<1x16xf32>
    %57 = vector.extract_strided_slice %11 {offsets = [0, 3], sizes = [1, 16], strides = [1, 1]} : vector<1x22xf32> to vector<1x16xf32>
    %58 = vector.broadcast %20 : f32 to vector<1x16xf32>
    %59 = arith.mulf %58, %57 : vector<1x16xf32>
    %60 = arith.addf %56, %59 : vector<1x16xf32>
    %61 = vector.extract_strided_slice %16 {offsets = [0, 3], sizes = [1, 16], strides = [1, 1]} : vector<1x22xf32> to vector<1x16xf32>
    %62 = vector.broadcast %27 : f32 to vector<1x16xf32>
    %63 = arith.mulf %62, %61 : vector<1x16xf32>
    %64 = arith.addf %60, %63 : vector<1x16xf32>
    %65 = vector.extract_strided_slice %11 {offsets = [0, 4], sizes = [1, 16], strides = [1, 1]} : vector<1x22xf32> to vector<1x16xf32>
    %66 = vector.broadcast %21 : f32 to vector<1x16xf32>
    %67 = arith.mulf %66, %65 : vector<1x16xf32>
    %68 = arith.addf %64, %67 : vector<1x16xf32>
    %69 = vector.extract_strided_slice %16 {offsets = [0, 4], sizes = [1, 16], strides = [1, 1]} : vector<1x22xf32> to vector<1x16xf32>
    %70 = vector.broadcast %28 : f32 to vector<1x16xf32>
    %71 = arith.mulf %70, %69 : vector<1x16xf32>
    %72 = arith.addf %68, %71 : vector<1x16xf32>
    %73 = vector.extract_strided_slice %11 {offsets = [0, 5], sizes = [1, 16], strides = [1, 1]} : vector<1x22xf32> to vector<1x16xf32>
    %74 = vector.broadcast %22 : f32 to vector<1x16xf32>
    %75 = arith.mulf %74, %73 : vector<1x16xf32>
    %76 = arith.addf %72, %75 : vector<1x16xf32>
    %77 = vector.extract_strided_slice %16 {offsets = [0, 5], sizes = [1, 16], strides = [1, 1]} : vector<1x22xf32> to vector<1x16xf32>
    %78 = vector.broadcast %29 : f32 to vector<1x16xf32>
    %79 = arith.mulf %78, %77 : vector<1x16xf32>
    %80 = arith.addf %76, %79 : vector<1x16xf32>
    %81 = vector.extract_strided_slice %11 {offsets = [0, 6], sizes = [1, 16], strides = [1, 1]} : vector<1x22xf32> to vector<1x16xf32>
    %82 = vector.broadcast %23 : f32 to vector<1x16xf32>
    %83 = arith.mulf %82, %81 : vector<1x16xf32>
    %84 = arith.addf %80, %83 : vector<1x16xf32>
    %85 = vector.extract_strided_slice %16 {offsets = [0, 6], sizes = [1, 16], strides = [1, 1]} : vector<1x22xf32> to vector<1x16xf32>
    %86 = vector.broadcast %30 : f32 to vector<1x16xf32>
    %87 = arith.mulf %86, %85 : vector<1x16xf32>
    %88 = arith.addf %84, %87 : vector<1x16xf32>
    %89 = arith.negf %88 : vector<1x16xf32>
    %90 = math.exp %89 : vector<1x16xf32>
    %cst_10 = arith.constant 1.000000e+00 : f32
    %91 = vector.broadcast %cst_10 : f32 to vector<1x16xf32>
    %92 = arith.addf %91, %90 : vector<1x16xf32>
    %93 = arith.divf %91, %92 : vector<1x16xf32>
    %94 = vector.shape_cast %93 : vector<1x16xf32> to vector<1x1x16xf32>
    %95 = vector.broadcast %94 : vector<1x1x16xf32> to vector<1x4x16xf32>
    %96 = arith.mulf %0, %95 : vector<1x4x16xf32>
    %c0_11 = arith.constant 0 : index
    %c0_12 = arith.constant 0 : index
    %c0_13 = arith.constant 0 : index
    %97 = vector.load %arg6[%c0_11, %c0_12, %c0_13] : memref<1x4x16xf32, #tpu.memory_space<vmem>>, vector<1x4x16xf32>
    tpu.vector_store %arg6[%c0_11, %c0_12, %c0_13], %96 {strides = array<i32>} : memref<1x4x16xf32, #tpu.memory_space<vmem>>, vector<1x4x16xf32>,
    return
  }
  func.func @transform_0(%arg0: i32, %arg1: i32) -> (i32, i32, i32) {
    %c0_i32 = arith.constant 0 : i32
    %c0_i32_0 = arith.constant 0 : i32
    return %arg0, %c0_i32, %arg1 : i32, i32, i32
  }
  func.func @transform_1(%arg0: i32, %arg1: i32) -> (i32, i32, i32, i32) {
    %c0_i32 = arith.constant 0 : i32
    %c0_i32_0 = arith.constant 0 : i32
    %c0_i32_1 = arith.constant 0 : i32
    return %arg0, %arg1, %c0_i32, %c0_i32_0 : i32, i32, i32, i32
  }
  func.func @transform_2(%arg0: i32, %arg1: i32) -> i32 {
    %c0_i32 = arith.constant 0 : i32
    %c0_i32_0 = arith.constant 0 : i32
    return %c0_i32 : i32
  }
  func.func @transform_3(%arg0: i32, %arg1: i32) -> i32 {
    %c0_i32 = arith.constant 0 : i32
    %c0_i32_0 = arith.constant 0 : i32
    return %c0_i32 : i32
  }
  func.func @transform_4(%arg0: i32, %arg1: i32) -> (i32, i32, i32) {
    %c0_i32 = arith.constant 0 : i32
    %c0_i32_0 = arith.constant 0 : i32
    return %arg0, %c0_i32, %arg1 : i32, i32, i32
  }
}

</mosaic_0001>

<llo_original>
// kernel: tpu_custom_call.1
$region0: #{tpu_custom_call.1}
  #allocation0 [shape = 'u32[]', space=smem, size = 0x4, offset = 0x4, fixed_abs, tag = 'smem constant byte address 0x4 - core index']
  #allocation1 [shape = 'u32[144,128]{1,0:T(1,128)}', space=vmem, size = 0x12000, scoped, tag = 'internal scratch']
  #allocation2 [shape = 'f32[1]{0:T(128)S(6)}', space=smem, size = 0x200, scoped, tag = 'scoped memory for tpu_custom_call.1']
  %s0 = inlined_call_operand.hbm [shape: f32[2,4,16], index: 0, kind: input, shape index: {}]
  %s1 = inlined_call_operand.vmem [shape: f32[2,1,2,128], index: 1, kind: input, shape index: {}]
  %s2 = inlined_call_operand.vmem [shape: f32[14], index: 2, kind: input, shape index: {}]
  %s3 = inlined_call_operand.<no memory space> [shape: f32[1], index: 3, kind: input, shape index: {}]
  %s4 = inlined_call_operand.hbm [shape: f32[2,4,16], index: 4, kind: output, shape index: {}]
  %s5 = sld [smem:[#allocation0]]
  $region57: #{tpu_custom_call.1} parent=0
    _
  %s7 = ssub.s32 1, %s5
  %s8 = scalar_select 0, %s7, %s5
  %9 = sst [smem:[#allocation2]] %s3
  $region1: #{tpu_custom_call.1} parent=0
    #allocation3 [shape = 'u8[4096]{0}', space=vmem, size = 0x1000, scoped, tag = 'input window, operand 0']
    #allocation4 [shape = 's32[2]{0}', space=sflag, size = 0x8, scoped, tag = 'scoped memory for tpu_custom_call.1']
    #allocation5 [shape = 's32[2]{0}', space=sflag, size = 0x8, scoped, tag = 'scoped memory for tpu_custom_call.1']
    #allocation6 [shape = 's32[2]{0}', space=sflag, size = 0x8, scoped, tag = 'scoped memory for tpu_custom_call.1']
    #allocation7 [shape = 'u8[512]{0}', space=smem, size = 0x200, scoped, tag = 'input window, operand 2, single buffered']
    #allocation8 [shape = 'u8[4096]{0}', space=vmem, size = 0x1000, scoped, tag = 'output window, operand 0']
    %10 = vsyncpa [#allocation4], 0
    %s11 = scalar_lea.sflag [#allocation4], 1
    %12 = vsyncpa %s11, 0
    %13 = vsyncpa [#allocation6], 0
    %14 = vsyncpa [#allocation5], 0
    %s15 = scalar_lea.sflag [#allocation5], 1
    %16 = vsyncpa %s15, 0
    loop: start=0, step=1, limit=4
    $region2: #{tpu_custom_call.1} parent=1 // loop_pre_header
      _
    $region3: #{tpu_custom_call.1} parent=1 // loop_header
      %s18 = sphi 0, %s22
      %p19 = scmp.ge.s32.totalorder %s18, 4
      %s25 = sphi 0, %s37
      %s26 = sphi 0, %s33
      %s27 = sphi 0, %s25
      %s28 = sphi 0, %s26
      %s29 = sphi 0, %s27
      %s30 = sphi 0, %s28
      %s42 = sphi 0, %s44
      %s45 = sphi 0, %s42
      %s46 = sphi 0, %s45
      %s62 = sphi 0, %s46
      %s70 = sphi 0, %s72
      %s73 = sphi 0, %s70
      %s74 = sphi 0, %s73
      %s90 = sphi 0, %s74
      %s94 = sphi 0, %s94
      %s96 = sphi 0, %s94
      %s97 = sphi 0, %s96
      %s111 = sphi 0, %s97
      %s115 = sphi 0, %s115
      %s117 = sphi 0, %s115
      %s118 = sphi 0, %s117
      %s132 = sphi 0, %s118
      %s140 = sphi 0, %s142
      %s143 = sphi 0, %s140
      %s144 = sphi 0, %s143
      %s160 = sphi 0, %s144
    $region4: #{tpu_custom_call.1} parent=1 // loop_header_branch
      %21 = sbr.rel (%p19) target = $region8
    $region5: #{tpu_custom_call.1} parent=1 // loop_body
      %s23 = ssub.s32 %s18, 1
      %s24 = ssub.s32 %s18, 2
      %s31 = sadd.s32 1, %s26
      %p32 = scmp.ge.s32.totalorder %s31, 1
      %s33 = scalar_select %p32, 0, %s31
      %s34 = sadd.s32 1, %s25
      %s35 = scalar_select %p32, %s34, %s25
      %p36 = scmp.ge.s32.totalorder %s35, 2
      %s37 = scalar_select %p36, 0, %s35
      %s38 = ssub.s32 %s25, %s37
      %s39 = ssub.s32 %s26, %s33
      %s40 = sor.u32 %s38, %s39
      %p41 = scmp.eq.s32.totalorder %s40, 0
      %s43 = sadd.s32 %s42, 1
      %s44 = scalar_select %p41, %s42, %s43
      %p47 = pneg %p41
      %p48 = scmp.eq.s32.totalorder %s18, 1
      %p49 = por %p47, %p48
      %p50 = scmp.ne.s32.totalorder %s42, %s45
      %p51 = scmp.eq.s32.totalorder %s18, 0
      %p52 = por %p50, %p51
      %p53 = scmp.ne.s32.totalorder %s42, %s45
      %p54 = scmp.eq.s32.totalorder %s23, 1
      %p55 = por %p53, %p54
      %p56 = scmp.ne.s32.totalorder %s45, %s46
      %p57 = scmp.eq.s32.totalorder %s23, 0
      %p58 = por %p56, %p57
      %p59 = scmp.ne.s32.totalorder %s45, %s46
      %p60 = scmp.eq.s32.totalorder %s24, 1
      %p61 = por %p59, %p60
      %p63 = scmp.ne.s32.totalorder %s46, %s62
      %p64 = scmp.eq.s32.totalorder %s24, 0
      %p65 = por %p63, %p64
      %s66 = ssub.s32 %s25, %s37
      %s67 = ssub.s32 %s26, %s33
      %s68 = sor.u32 %s66, %s67
      %p69 = scmp.eq.s32.totalorder %s68, 0
      %s71 = sadd.s32 %s70, 1
      %s72 = scalar_select %p69, %s70, %s71
      %p75 = pneg %p69
      %p76 = scmp.eq.s32.totalorder %s18, 1
      %p77 = por %p75, %p76
      %p78 = scmp.ne.s32.totalorder %s70, %s73
      %p79 = scmp.eq.s32.totalorder %s18, 0
      %p80 = por %p78, %p79
      %p81 = scmp.ne.s32.totalorder %s70, %s73
      %p82 = scmp.eq.s32.totalorder %s23, 1
      %p83 = por %p81, %p82
      %p84 = scmp.ne.s32.totalorder %s73, %s74
      %p85 = scmp.eq.s32.totalorder %s23, 0
      %p86 = por %p84, %p85
      %p87 = scmp.ne.s32.totalorder %s73, %s74
      %p88 = scmp.eq.s32.totalorder %s24, 1
      %p89 = por %p87, %p88
      %p91 = scmp.ne.s32.totalorder %s74, %s90
      %p92 = scmp.eq.s32.totalorder %s24, 0
      %p93 = por %p91, %p92
      %s95 = sadd.s32 %s94, 1
      %p98 = scmp.eq.s32.totalorder %s18, 1
      %p99 = scmp.ne.s32.totalorder %s94, %s96
      %p100 = scmp.eq.s32.totalorder %s18, 0
      %p101 = por %p99, %p100
      %p102 = scmp.ne.s32.totalorder %s94, %s96
      %p103 = scmp.eq.s32.totalorder %s23, 1
      %p104 = por %p102, %p103
      %p105 = scmp.ne.s32.totalorder %s96, %s97
      %p106 = scmp.eq.s32.totalorder %s23, 0
      %p107 = por %p105, %p106
      %p108 = scmp.ne.s32.totalorder %s96, %s97
      %p109 = scmp.eq.s32.totalorder %s24, 1
      %p110 = por %p108, %p109
      %p112 = scmp.ne.s32.totalorder %s97, %s111
      %p113 = scmp.eq.s32.totalorder %s24, 0
      %p114 = por %p112, %p113
      %s116 = sadd.s32 %s115, 1
      %p119 = scmp.eq.s32.totalorder %s18, 1
      %p120 = scmp.ne.s32.totalorder %s115, %s117
      %p121 = scmp.eq.s32.totalorder %s18, 0
      %p122 = por %p120, %p121
      %p123 = scmp.ne.s32.totalorder %s115, %s117
      %p124 = scmp.eq.s32.totalorder %s23, 1
      %p125 = por %p123, %p124
      %p126 = scmp.ne.s32.totalorder %s117, %s118
      %p127 = scmp.eq.s32.totalorder %s23, 0
      %p128 = por %p126, %p127
      %p129 = scmp.ne.s32.totalorder %s117, %s118
      %p130 = scmp.eq.s32.totalorder %s24, 1
      %p131 = por %p129, %p130
      %p133 = scmp.ne.s32.totalorder %s118, %s132
      %p134 = scmp.eq.s32.totalorder %s24, 0
      %p135 = por %p133, %p134
      %s136 = ssub.s32 %s25, %s37
      %s137 = ssub.s32 %s26, %s33
      %s138 = sor.u32 %s136, %s137
      %p139 = scmp.eq.s32.totalorder %s138, 0
      %s141 = sadd.s32 %s140, 1
      %s142 = scalar_select %p139, %s140, %s141
      %p145 = pneg %p139
      %p146 = scmp.eq.s32.totalorder %s18, 1
      %p147 = por %p145, %p146
      %p148 = scmp.ne.s32.totalorder %s140, %s143
      %p149 = scmp.eq.s32.totalorder %s18, 0
      %p150 = por %p148, %p149
      %p151 = scmp.ne.s32.totalorder %s140, %s143
      %p152 = scmp.eq.s32.totalorder %s23, 1
      %p153 = por %p151, %p152
      %p154 = scmp.ne.s32.totalorder %s143, %s144
      %p155 = scmp.eq.s32.totalorder %s23, 0
      %p156 = por %p154, %p155
      %p157 = scmp.ne.s32.totalorder %s143, %s144
      %p158 = scmp.eq.s32.totalorder %s24, 1
      %p159 = por %p157, %p158
      %p161 = scmp.ne.s32.totalorder %s144, %s160
      %p162 = scmp.eq.s32.totalorder %s24, 0
      %p163 = por %p161, %p162
      %p164 = scmp.le.s32.totalorder 1, %s18
      %p165 = scmp.lt.s32.totalorder %s18, 3
      %p166 = pnand %p164, %p165
      %p167 = pneg %p166
      // Predicated region
      $region9: #{tpu_custom_call.1} parent=5 // pred_check
        _
      $region10: #{tpu_custom_call.1} parent=5 // pred_check_branch
        %169 = sbr.rel (%p166) target = $region12
      $region11: #{tpu_custom_call.1} parent=5 // pred_region
        %s170 = ssub.s32 %s18, 1
        // Predicated region
        $region13: #{tpu_custom_call.1} parent=11 // pred_check
          %p171 = pneg %p107
        $region14: #{tpu_custom_call.1} parent=11 // pred_check_branch
          %173 = sbr.rel (%p171) target = $region16
        $region15: #{tpu_custom_call.1} parent=11 // pred_region
          %s175 = ssub.s32 16, 16
          %176 = vsyncadd [#allocation6], %s175
          %s178 = sshll.u32 %s2, 4
          %s179 = int_to_ptr.vmem [resolvable:$true] %s178
          %181 = dma.vmem_to_smem %s179, 16, [#allocation7], [#allocation6]
        $region16: #{tpu_custom_call.1} parent=11 // pred_fallthru
          _
        // Predicated region
        $region17: #{tpu_custom_call.1} parent=11 // pred_check
          %p182 = pneg %p128
        $region18: #{tpu_custom_call.1} parent=11 // pred_check_branch
          %184 = sbr.rel (%p182) target = $region20
        $region19: #{tpu_custom_call.1} parent=11 // pred_region
          _
        $region20: #{tpu_custom_call.1} parent=11 // pred_fallthru
          _
      $region12: #{tpu_custom_call.1} parent=5 // pred_fallthru
        _
      %p185 = scmp.lt.s32.totalorder %s18, 2
      // Predicated region
      $region21: #{tpu_custom_call.1} parent=5 // pred_check
        %p186 = pneg %p185
      $region22: #{tpu_custom_call.1} parent=5 // pred_check_branch
        %188 = sbr.rel (%p186) target = $region24
      $region23: #{tpu_custom_call.1} parent=5 // pred_region
        // Predicated region
        $region25: #{tpu_custom_call.1} parent=23 // pred_check
          %p189 = pneg %p52
        $region26: #{tpu_custom_call.1} parent=23 // pred_check_branch
          %191 = sbr.rel (%p189) target = $region28
        $region27: #{tpu_custom_call.1} parent=23 // pred_region
          %s192 = sand.u32 %s42, 1
          %s193 = scalar_lea.sflag [#allocation4], %s192
          %s194 = sand.u32 %s42, 1
          %s195 = smul.addr %s194, 4
          %s196 = scalar_lea.vmem [#allocation3], %s195
          %s198 = ssub.s32 64, 64
          %199 = vsyncadd %s193, %s198
          %s200 = sadd.s32 %s26, %s25
          %s201 = smul.addr %s200, 64
          %s202 = scalar_lea.hbm %s0, %s201
          %s204 = sshll.u32 %s196, 4
          %s205 = int_to_ptr.vmem [resolvable:$true] %s204
          %207 = dma.hbm_to_vmem [thread:$0]  %s202, 64, %s205, %s193
        $region28: #{tpu_custom_call.1} parent=23 // pred_fallthru
          _
        // Predicated region
        $region29: #{tpu_custom_call.1} parent=23 // pred_check
          %p208 = pneg %p80
        $region30: #{tpu_custom_call.1} parent=23 // pred_check_branch
          %210 = sbr.rel (%p208) target = $region32
        $region31: #{tpu_custom_call.1} parent=23 // pred_region
          %p211 = scmp.lt.s32.totalorder %s25, 1
          %s212 = scalar_select %p211, %s25, 1
          %p213 = scmp.lt.s32.totalorder %s26, 0
          %s214 = scalar_select %p213, %s26, 0
          %s215 = sadd.s32 %s214, %s212
          %s216 = smul.addr %s215, 2
          %s217 = scalar_lea.vmem %s1, %s216
        $region32: #{tpu_custom_call.1} parent=23 // pred_fallthru
          _
      $region24: #{tpu_custom_call.1} parent=5 // pred_fallthru
        _
      %p218 = scmp.le.s32.totalorder 1, %s18
      %p219 = scmp.lt.s32.totalorder %s18, 3
      %p220 = pnand %p218, %p219
      %p221 = pneg %p220
      // Predicated region
      $region33: #{tpu_custom_call.1} parent=5 // pred_check
        _
      $region34: #{tpu_custom_call.1} parent=5 // pred_check_branch
        %223 = sbr.rel (%p220) target = $region36
      $region35: #{tpu_custom_call.1} parent=5 // pred_region
        %s224 = ssub.s32 %s18, 1
        %s225 = sand.u32 %s45, 1
        %s226 = scalar_lea.sflag [#allocation4], %s225
        %s227 = sand.u32 %s45, 1
        %s228 = smul.addr %s227, 4
        %s229 = scalar_lea.vmem [#allocation3], %s228
        // Predicated region
        $region37: #{tpu_custom_call.1} parent=35 // pred_check
          %p230 = pneg %p58
        $region38: #{tpu_custom_call.1} parent=35 // pred_check_branch
          %232 = sbr.rel (%p230) target = $region40
        $region39: #{tpu_custom_call.1} parent=35 // pred_region
          %233 = dma.done %s226, 64
        $region40: #{tpu_custom_call.1} parent=35 // pred_fallthru
          _
        // Predicated region
        $region41: #{tpu_custom_call.1} parent=35 // pred_check
          %p234 = pneg %p107
        $region42: #{tpu_custom_call.1} parent=35 // pred_check_branch
          %236 = sbr.rel (%p234) target = $region44
        $region43: #{tpu_custom_call.1} parent=35 // pred_region
          %237 = dma.done [#allocation6], 16
        $region44: #{tpu_custom_call.1} parent=35 // pred_fallthru
          _
        %238 = sfence
        %s239 = sand.u32 %s45, 1
        %s240 = scalar_lea.sflag [#allocation4], %s239
        %s241 = sand.u32 %s45, 1
        %s242 = smul.addr %s241, 4
        %s243 = scalar_lea.vmem [#allocation3], %s242
        %p244 = pneg %p58
        %p245 = pneg %p55
        %p246 = scmp.lt.s32.totalorder %s27, 1
        %s247 = scalar_select %p246, %s27, 1
        %p248 = scmp.lt.s32.totalorder %s28, 0
        %s249 = scalar_select %p248, %s28, 0
        %s250 = sadd.s32 %s249, %s247
        %s251 = smul.addr %s250, 2
        %s252 = scalar_lea.vmem %s1, %s251
        %p253 = pneg %p86
        %p254 = pneg %p83
        %p255 = pneg %p107
        %p256 = pneg %p104
        %p257 = pneg %p128
        %p258 = pneg %p125
        %p259 = pneg %p156
        %p260 = pneg %p153
        %s261 = sand.u32 %s143, 1
        %s262 = scalar_lea.sflag [#allocation5], %s261
        %s263 = sand.u32 %s143, 1
        %s264 = smul.addr %s263, 4
        %s265 = scalar_lea.vmem [#allocation8], %s264
        %p266 = scmp.lt.s32.totalorder %s27, 1
        %s267 = scalar_select %p266, %s27, 1
        %p268 = scmp.lt.s32.totalorder %s28, 0
        %s269 = scalar_select %p268, %s28, 0
        %s270 = sadd.s32 %s269, %s267
        %s271 = smul.addr %s270, 2
        %s272 = scalar_lea.vmem %s1, %s271
        %v273 = vld [vmem:[%s229] sm:$0xf]
        %vm274 = vcmask 125952
        %v275 = vsel %vm274, %v273, 0.0
        %v276 = vrot.slane %v275, 4
        %v277 = vadd.f32 %v275, %v276
        %v278 = vrot.slane %v277, 2
        %v279 = vadd.f32 %v277, %v278
        %v280 = vrot.slane %v279, 1
        %v281 = vadd.f32 %v279, %v280
        %v282 = vrcp.pop 4.0
        %v283 = vmul.f32 %v281, %v282
        %v284 = vsel %vm274, %v273, -inf
        %v285 = vrot.slane %v284, 4
        %v286 = vmax.f32 %v284, %v285
        %v287 = vrot.slane %v286, 2
        %v288 = vmax.f32 %v286, %v287
        %v289 = vrot.slane %v288, 1
        %v290 = vmax.f32 %v288, %v289
        %v291 = vld [vmem:[%s272] sm:$0x3]
        %293 = vrot.lane.b32.xlu0 %v283, 3
        %v294 = vpop.permute.xlu0 %293
        %297 = vrot.lane.b32.xlu0 %v291, 16
        %v298 = vpop.permute.xlu0 %297
        %vm300 = vcmask 23552
        %v301 = vsel %vm300, %v291, %v294
        %vm302 = vcmask 154624
        %v303 = vsel %vm302, %v301, %v298
        %305 = vrot.lane.b32.xlu0 %v290, 3
        %v306 = vpop.permute.xlu0 %305
        %v308 = vsel %vm300, %v291, %v306
        %v309 = vsel %vm302, %v308, %v298
        %s310 = sld [smem:[#allocation7]]
        %s311 = sld [smem:[#allocation7 + $0x1]]
        %s312 = sld [smem:[#allocation7 + $0x2]]
        %s313 = sld [smem:[#allocation7 + $0x3]]
        %s314 = sld [smem:[#allocation7 + $0x4]]
        %s315 = sld [smem:[#allocation7 + $0x5]]
        %s316 = sld [smem:[#allocation7 + $0x6]]
        %s317 = sld [smem:[#allocation7 + $0x7]]
        %s318 = sld [smem:[#allocation7 + $0x8]]
        %s319 = sld [smem:[#allocation7 + $0x9]]
        %s320 = sld [smem:[#allocation7 + $0xa]]
        %s321 = sld [smem:[#allocation7 + $0xb]]
        %s322 = sld [smem:[#allocation7 + $0xc]]
        %s323 = sld [smem:[#allocation7 + $0xd]]
        %s324 = sld [smem:[#allocation2]]
        %v325 = vstv %s324
        %v326 = vstv %s310
        %v327 = vmul.f32 %v326, %v303
        %v328 = vadd.f32 %v325, %v327
        %v329 = vstv %s317
        %v330 = vmul.f32 %v329, %v309
        %v332 = vrot.slane %v330, 1
        %v334 = vadd.f32 %v328, %v332
        %v335 = vstv %s311
        %v336 = vmul.f32 %v335, %v303
        %338 = vrot.lane.b32.xlu0 %v336, 127
        %v339 = vpop.permute.xlu0 %338
        %v341 = vadd.f32 %v334, %v339
        %v342 = vstv %s318
        %v343 = vmul.f32 %v342, %v309
        %v345 = vrot.slane %v343, 1
        %346 = vrot.lane.b32.xlu0 %v345, 127
        %v347 = vpop.permute.xlu0 %346
        %v349 = vadd.f32 %v341, %v347
        %v350 = vstv %s312
        %v351 = vmul.f32 %v350, %v303
        %353 = vrot.lane.b32.xlu0 %v351, 126
        %v354 = vpop.permute.xlu0 %353
        %v356 = vadd.f32 %v349, %v354
        %v357 = vstv %s319
        %v358 = vmul.f32 %v357, %v309
        %v360 = vrot.slane %v358, 1
        %361 = vrot.lane.b32.xlu0 %v360, 126
        %v362 = vpop.permute.xlu0 %361
        %v364 = vadd.f32 %v356, %v362
        %v365 = vstv %s313
        %v366 = vmul.f32 %v365, %v303
        %368 = vrot.lane.b32.xlu0 %v366, 125
        %v369 = vpop.permute.xlu0 %368
        %v371 = vadd.f32 %v364, %v369
        %v372 = vstv %s320
        %v373 = vmul.f32 %v372, %v309
        %v375 = vrot.slane %v373, 1
        %376 = vrot.lane.b32.xlu0 %v375, 125
        %v377 = vpop.permute.xlu0 %376
        %v379 = vadd.f32 %v371, %v377
        %v380 = vstv %s314
        %v381 = vmul.f32 %v380, %v303
        %383 = vrot.lane.b32.xlu0 %v381, 124
        %v384 = vpop.permute.xlu0 %383
        %v386 = vadd.f32 %v379, %v384
        %v387 = vstv %s321
        %v388 = vmul.f32 %v387, %v309
        %v390 = vrot.slane %v388, 1
        %391 = vrot.lane.b32.xlu0 %v390, 124
        %v392 = vpop.permute.xlu0 %391
        %v394 = vadd.f32 %v386, %v392
        %v395 = vstv %s315
        %v396 = vmul.f32 %v395, %v303
        %398 = vrot.lane.b32.xlu0 %v396, 123
        %v399 = vpop.permute.xlu0 %398
        %v401 = vadd.f32 %v394, %v399
        %v402 = vstv %s322
        %v403 = vmul.f32 %v402, %v309
        %v405 = vrot.slane %v403, 1
        %406 = vrot.lane.b32.xlu0 %v405, 123
        %v407 = vpop.permute.xlu0 %406
        %v409 = vadd.f32 %v401, %v407
        %v410 = vstv %s316
        %v411 = vmul.f32 %v410, %v303
        %413 = vrot.lane.b32.xlu0 %v411, 122
        %v414 = vpop.permute.xlu0 %413
        %v416 = vadd.f32 %v409, %v414
        %v417 = vstv %s323
        %v418 = vmul.f32 %v417, %v309
        %v420 = vrot.slane %v418, 1
        %421 = vrot.lane.b32.xlu0 %v420, 122
        %v422 = vpop.permute.xlu0 %421
        %v424 = vadd.f32 %v416, %v422
        %v425 = vxor.u32 %v424, 2147483648
        %v426 = vmul.f32 %v425, 1.442695
        %v427 = vpow.pop %v426
        %v428 = vadd.f32 %v427, 1.0
        %v429 = vrcp.pop %v428
        %v430 = vmul.f32 1.0, %v429
        %v431 = vlaneseq
        %v432 = vshrl.u32 %v431, 7
        %v433 = vsub.s32 0, %v432
        %v434 = vrot.slane %v430, %v433
        %v435 = vmul.f32 %v273, %v434
        %436 = vst.msk [vmem:[%s265] sm:$0xf] %vm274, %v435
        %s437 = sand.u32 %s143, 1
        %s438 = scalar_lea.sflag [#allocation5], %s437
        %s439 = sand.u32 %s143, 1
        %s440 = smul.addr %s439, 4
        %s441 = scalar_lea.vmem [#allocation8], %s440
        // Predicated region
        $region45: #{tpu_custom_call.1} parent=35 // pred_check
          %p442 = pneg %p153
        $region46: #{tpu_custom_call.1} parent=35 // pred_check_branch
          %444 = sbr.rel (%p442) target = $region48
        $region47: #{tpu_custom_call.1} parent=35 // pred_region
          %s446 = ssub.s32 64, 64
          %447 = vsyncadd %s438, %s446
          %s448 = sadd.s32 %s28, %s27
          %s449 = smul.addr %s448, 64
          %s450 = scalar_lea.hbm %s4, %s449
          %s452 = sshll.u32 %s441, 4
          %s453 = int_to_ptr.vmem [resolvable:$true] %s452
          %455 = dma.vmem_to_hbm [thread:$0]  %s453, 64, %s450, %s438
        $region48: #{tpu_custom_call.1} parent=35 // pred_fallthru
          _
      $region36: #{tpu_custom_call.1} parent=5 // pred_fallthru
        _
      %p456 = scmp.le.s32.totalorder 2, %s18
      // Predicated region
      $region49: #{tpu_custom_call.1} parent=5 // pred_check
        %p457 = pneg %p456
      $region50: #{tpu_custom_call.1} parent=5 // pred_check_branch
        %459 = sbr.rel (%p457) target = $region52
      $region51: #{tpu_custom_call.1} parent=5 // pred_region
        %s460 = ssub.s32 %s18, 2
        // Predicated region
        $region53: #{tpu_custom_call.1} parent=51 // pred_check
          %p461 = pneg %p159
        $region54: #{tpu_custom_call.1} parent=51 // pred_check_branch
          %463 = sbr.rel (%p461) target = $region56
        $region55: #{tpu_custom_call.1} parent=51 // pred_region
          %s464 = sand.u32 %s144, 1
          %s465 = scalar_lea.sflag [#allocation5], %s464
          %s466 = sand.u32 %s144, 1
          %s467 = smul.addr %s466, 4
          %s468 = scalar_lea.vmem [#allocation8], %s467
          %469 = dma.done %s465, 64
        $region56: #{tpu_custom_call.1} parent=51 // pred_fallthru
          _
      $region52: #{tpu_custom_call.1} parent=5 // pred_fallthru
        _
    $region6: #{tpu_custom_call.1} parent=1 // loop_footer
      %s22 = sadd.s32 1, %s18
    $region7: #{tpu_custom_call.1} parent=1 // loop_footer_branch
      %17 = sbr.rel target = $region3
    $region8: #{tpu_custom_call.1} parent=1 // loop_exit
      _
    %470 = vsyncpa [#allocation4], 1
    %s471 = scalar_lea.sflag [#allocation4], 1
    %472 = vsyncpa %s471, 1
    %473 = vsyncpa [#allocation5], 1
    %s474 = scalar_lea.sflag [#allocation5], 1
    %475 = vsyncpa %s474, 1
    %476 = vsyncpa [#allocation6], 1
    %s477 = scalar_lea.sflag [#allocation6], 1
    %478 = vsyncpa %s477, 1

</llo_original>
